<compile_context>
chip_gen: v6e
topology: v6e:2x2x1
jax: 0.10.0
libtpu: 0.0.40
codegen_flags: <defaults>
</compile_context>

<pallas_src>
import jax
import jax.numpy as jnp
from jax.experimental import pallas as pl
from jax.experimental.pallas import tpu as pltpu

BN_EPS = 1e-5


def _cdiv(a, b):
    return -(-a // b)


def _round_up(x, m):
    return _cdiv(x, m) * m


def _choose_tile_b(B, tile_max=1024):
    """Pick a batch tile: minimal padding, >=2 grid steps for large B (v7x)."""
    b_aligned = _round_up(B, 8)          # f32 sublane granularity
    if b_aligned <= 256:
        return b_aligned                 # one small tile, no extra padding
    n_steps = max(2, _cdiv(b_aligned, tile_max))     # megacore needs >=2 steps
    tile = _round_up(_cdiv(b_aligned, n_steps), 256)  # fill MXU M dimension
    return min(tile, tile_max)


# ---------------------------------------------------------------------------
# Kernel: one batch tile, all five layers fused.
# ---------------------------------------------------------------------------
def _mlp_kernel(x_ref,
                w1_ref, s1_ref,
                w2_ref, s2_ref,
                w3_ref, s3_ref,
                w4_ref, s4_ref,
                w5_ref, b5_ref,
                o_ref):
    def hidden(h_bf16, w_ref, shift_ref):
        # bf16 operands -> MXU, f32 accumulate; shift/ReLU in f32 on the VPU.
        h = jnp.dot(h_bf16, w_ref[...], preferred_element_type=jnp.float32)
        h = jnp.maximum(h + shift_ref[...], 0.0)
        return h.astype(jnp.bfloat16)

    # f32 -> bf16 cast rides the VPU (huge slack here); x stays f32 in HBM.
    h = hidden(x_ref[...].astype(jnp.bfloat16), w1_ref, s1_ref)
    h = hidden(h, w2_ref, s2_ref)
    h = hidden(h, w3_ref, s3_ref)
    h = hidden(h, w4_ref, s4_ref)
    # Output layer: fc5 with bias, no activation, stored unpadded.
    o_ref[...] = (jnp.dot(h, w5_ref[...], preferred_element_type=jnp.float32)
                  + b5_ref[...])


# ---------------------------------------------------------------------------
# One-time parameter preparation (fold BN into weights, cast to bf16).
# Call once and reuse the result across forward calls.
# ---------------------------------------------------------------------------
def prepare_params(params):
    def fold(w_t, bn):
        gamma, beta, mean, var = bn
        scale = gamma / jnp.sqrt(var + BN_EPS)            # f32 fold
        shift = beta - mean * scale
        w_scaled = (w_t * scale[None, :]).astype(jnp.bfloat16)
        return w_scaled, shift.reshape(1, -1).astype(jnp.float32)

    w1, s1 = fold(params["w1_t"], params["bn1"])
    w2, s2 = fold(params["w2_t"], params["bn2"])
    w3, s3 = fold(params["w3_t"], params["bn3"])
    w4, s4 = fold(params["w4_t"], params["bn4"])
    w5 = params["w5_t"].astype(jnp.bfloat16)
    b5 = params["b5"].reshape(1, -1).astype(jnp.float32)
    return (w1, s1, w2, s2, w3, s3, w4, s4, w5, b5)


# ---------------------------------------------------------------------------
# Forward pass.
# ---------------------------------------------------------------------------
def regression_net_forward(x, folded, tile_max=1024):
    """x: (B, input_dim) float32. folded: output of prepare_params()."""
    B, input_dim = x.shape
    output_dim = folded[-2].shape[1]

    tile_b = _choose_tile_b(B, tile_max)
    b_pad = _round_up(B, tile_b)
    # Pad batch only when needed (padded rows compute relu(shift) garbage but
    # are sliced off; eval-mode BN has no cross-row coupling).
    x_p = x if b_pad == B else jnp.pad(x, ((0, b_pad - B), (0, 0)))

    grid = (b_pad // tile_b,)

    def resident(a):
        # Full-array block, same block index every step -> stays VMEM-resident
        # across grid iterations while activation DMA double-buffers.
        return pl.BlockSpec(a.shape, lambda i: (0, 0))

    in_specs = [pl.BlockSpec((tile_b, input_dim), lambda i: (i, 0))]
    in_specs += [resident(a) for a in folded]

    out = pl.pallas_call(
        _mlp_kernel,
        out_shape=jax.ShapeDtypeStruct((b_pad, output_dim), jnp.float32),
        grid=grid,
        in_specs=in_specs,
        # Block last dim == full array dim -> legal even for tiny output_dim;
        # avoids writing a 128-lane f32 padded output stream.
        out_specs=pl.BlockSpec((tile_b, output_dim), lambda i: (i, 0)),
        compiler_params=pltpu.CompilerParams(
            dimension_semantics=("parallel",)),   # v7x: shard batch over 2 TCs
    )(x_p, *folded)

    return out if b_pad == B else out[:B]


# ---------------------------------------------------------------------------
# Synthetic params + pure-JAX reference.
# ---------------------------------------------------------------------------
def init_params(key, input_dim, output_dim):
    ks = jax.random.split(key, 12)
    dims = [input_dim, 256, 128, 64, 32]

    def lin(k, fan_in, fan_out):
        bound = 1.0 / jnp.sqrt(fan_in)
        return jax.random.uniform(k, (fan_in, fan_out), jnp.float32,
                                  minval=-bound, maxval=bound)

    def bn(k, n):
        kg, kb, km, kv = jax.random.split(k, 4)
        gamma = 1.0 + 0.1 * jax.random.normal(kg, (n,), jnp.float32)
        beta = 0.1 * jax.random.normal(kb, (n,), jnp.float32)
        mean = 0.1 * jax.random.normal(km, (n,), jnp.float32)
        var = jnp.abs(jax.random.normal(kv, (n,), jnp.float32)) + 0.5
        return gamma, beta, mean, var

    return {
        "w1_t": lin(ks[0], dims[0], dims[1]),
        "w2_t": lin(ks[1], dims[1], dims[2]),
        "w3_t": lin(ks[2], dims[2], dims[3]),
        "w4_t": lin(ks[3], dims[3], dims[4]),
        "w5_t": lin(ks[4], dims[4], output_dim),
        "b5": 0.01 * jax.random.normal(ks[5], (output_dim,), jnp.float32),
        "bn1": bn(ks[6], dims[1]),
        "bn2": bn(ks[7], dims[2]),
        "bn3": bn(ks[8], dims[3]),
        "bn4": bn(ks[9], dims[4]),
    }


def reference_forward(x, params):
    h = x
    for wname, bnname in (("w1_t", "bn1"), ("w2_t", "bn2"),
                          ("w3_t", "bn3"), ("w4_t", "bn4")):
        gamma, beta, mean, var = params[bnname]
        h = h @ params[wname]
        h = (h - mean) / jnp.sqrt(var + BN_EPS) * gamma + beta
        h = jnp.maximum(h, 0.0)
    return h @ params["w5_t"] + params["b5"]


if __name__ == "__main__":
    key = jax.random.PRNGKey(0)
    kx, kp = jax.random.split(key)

    B, input_dim, output_dim = 8, 32, 4
    x = jax.random.normal(kx, (B, input_dim), jnp.float32)
    params = init_params(kp, input_dim, output_dim)

    folded = jax.block_until_ready(prepare_params(params))   # one-time prep

    out = regression_net_forward(x, folded)
    out = jax.block_until_ready(out)

    ref = reference_forward(x, params)
    assert out.shape == (B, output_dim)
    # bf16 matmul operands (f32 accumulate) vs pure-f32 reference -> loose tol
    assert jnp.allclose(out, ref, atol=5e-2, rtol=5e-2), "mismatch vs reference"

    print("KERNEL_OK")
</pallas_src>

<mosaic_0001>
module attributes {stable_mosaic.version = 11 : i64} {
  func.func @_mlp_kernel(%arg0: i32, %arg1: memref<8x32xf32, #tpu.memory_space<vmem>>, %arg2: memref<32x256xbf16, #tpu.memory_space<vmem>>, %arg3: memref<1x256xf32, #tpu.memory_space<vmem>>, %arg4: memref<256x128xbf16, #tpu.memory_space<vmem>>, %arg5: memref<1x128xf32, #tpu.memory_space<vmem>>, %arg6: memref<128x64xbf16, #tpu.memory_space<vmem>>, %arg7: memref<1x64xf32, #tpu.memory_space<vmem>>, %arg8: memref<64x32xbf16, #tpu.memory_space<vmem>>, %arg9: memref<1x32xf32, #tpu.memory_space<vmem>>, %arg10: memref<32x4xbf16, #tpu.memory_space<vmem>>, %arg11: memref<1x4xf32, #tpu.memory_space<vmem>>, %arg12: memref<8x4xf32, #tpu.memory_space<vmem>>) attributes {dimension_semantics = [#tpu.dimension_semantics<parallel>], iteration_bounds = array<i64: 1>, scalar_prefetch = 0 : i64, scratch_operands = 0 : i64, tpu.core_type = #tpu.core_type<tc>, window_params = [{transform_indices = @transform_0, window_bounds = array<i64: 8, 32>}, {pipeline_mode = #tpu.pipeline_mode<synchronous>, transform_indices = @transform_1, window_bounds = array<i64: 32, 256>}, {pipeline_mode = #tpu.pipeline_mode<synchronous>, transform_indices = @transform_2, window_bounds = array<i64: 1, 256>}, {pipeline_mode = #tpu.pipeline_mode<synchronous>, transform_indices = @transform_3, window_bounds = array<i64: 256, 128>}, {pipeline_mode = #tpu.pipeline_mode<synchronous>, transform_indices = @transform_4, window_bounds = array<i64: 1, 128>}, {pipeline_mode = #tpu.pipeline_mode<synchronous>, transform_indices = @transform_5, window_bounds = array<i64: 128, 64>}, {pipeline_mode = #tpu.pipeline_mode<synchronous>, transform_indices = @transform_6, window_bounds = array<i64: 1, 64>}, {pipeline_mode = #tpu.pipeline_mode<synchronous>, transform_indices = @transform_7, window_bounds = array<i64: 64, 32>}, {pipeline_mode = #tpu.pipeline_mode<synchronous>, transform_indices = @transform_8, window_bounds = array<i64: 1, 32>}, {pipeline_mode = #tpu.pipeline_mode<synchronous>, transform_indices = @transform_9, window_bounds = array<i64: 32, 4>}, {pipeline_mode = #tpu.pipeline_mode<synchronous>, transform_indices = @transform_10, window_bounds = array<i64: 1, 4>}, {transform_indices = @transform_11, window_bounds = array<i64: 8, 4>}]} {
    %c0 = arith.constant 0 : index
    %c0_0 = arith.constant 0 : index
    %0 = vector.load %arg1[%c0, %c0_0] : memref<8x32xf32, #tpu.memory_space<vmem>>, vector<8x32xf32>
    %1 = arith.truncf %0 : vector<8x32xf32> to vector<8x32xbf16>
    %c0_1 = arith.constant 0 : index
    %c0_2 = arith.constant 0 : index
    %2 = vector.load %arg2[%c0_1, %c0_2] : memref<32x256xbf16, #tpu.memory_space<vmem>>, vector<32x256xbf16>
    %cst = arith.constant dense<0.000000e+00> : vector<8x256xf32>
    %3 = tpu.matmul %1, %2, %cst {dimension_numbers = #tpu.dot_dimension_numbers<[1], [0], [0], [1], [0, 0, 1, 1], [], []>} : vector<8x32xbf16>, vector<32x256xbf16>, vector<8x256xf32> -> vector<8x256xf32>
    %c0_3 = arith.constant 0 : index
    %c0_4 = arith.constant 0 : index
    %4 = vector.load %arg3[%c0_3, %c0_4] : memref<1x256xf32, #tpu.memory_space<vmem>>, vector<1x256xf32>
    %5 = vector.broadcast %4 : vector<1x256xf32> to vector<8x256xf32>
    %6 = arith.addf %3, %5 : vector<8x256xf32>
    %cst_5 = arith.constant 0.000000e+00 : f32
    %7 = vector.broadcast %cst_5 : f32 to vector<8x256xf32>
    %8 = arith.maximumf %6, %7 : vector<8x256xf32>
    %9 = arith.truncf %8 : vector<8x256xf32> to vector<8x256xbf16>
    %c0_6 = arith.constant 0 : index
    %c0_7 = arith.constant 0 : index
    %10 = vector.load %arg4[%c0_6, %c0_7] : memref<256x128xbf16, #tpu.memory_space<vmem>>, vector<256x128xbf16>
    %cst_8 = arith.constant dense<0.000000e+00> : vector<8x128xf32>
    %11 = tpu.matmul %9, %10, %cst_8 {dimension_numbers = #tpu.dot_dimension_numbers<[1], [0], [0], [1], [0, 0, 1, 1], [], []>} : vector<8x256xbf16>, vector<256x128xbf16>, vector<8x128xf32> -> vector<8x128xf32>
    %c0_9 = arith.constant 0 : index
    %c0_10 = arith.constant 0 : index
    %12 = vector.load %arg5[%c0_9, %c0_10] : memref<1x128xf32, #tpu.memory_space<vmem>>, vector<1x128xf32>
    %13 = vector.broadcast %12 : vector<1x128xf32> to vector<8x128xf32>
    %14 = arith.addf %11, %13 : vector<8x128xf32>
    %cst_11 = arith.constant 0.000000e+00 : f32
    %15 = vector.broadcast %cst_11 : f32 to vector<8x128xf32>
    %16 = arith.maximumf %14, %15 : vector<8x128xf32>
    %17 = arith.truncf %16 : vector<8x128xf32> to vector<8x128xbf16>
    %c0_12 = arith.constant 0 : index
    %c0_13 = arith.constant 0 : index
    %18 = vector.load %arg6[%c0_12, %c0_13] : memref<128x64xbf16, #tpu.memory_space<vmem>>, vector<128x64xbf16>
    %cst_14 = arith.constant dense<0.000000e+00> : vector<8x64xf32>
    %19 = tpu.matmul %17, %18, %cst_14 {dimension_numbers = #tpu.dot_dimension_numbers<[1], [0], [0], [1], [0, 0, 1, 1], [], []>} : vector<8x128xbf16>, vector<128x64xbf16>, vector<8x64xf32> -> vector<8x64xf32>
    %c0_15 = arith.constant 0 : index
    %c0_16 = arith.constant 0 : index
    %20 = vector.load %arg7[%c0_15, %c0_16] : memref<1x64xf32, #tpu.memory_space<vmem>>, vector<1x64xf32>
    %21 = vector.broadcast %20 : vector<1x64xf32> to vector<8x64xf32>
    %22 = arith.addf %19, %21 : vector<8x64xf32>
    %cst_17 = arith.constant 0.000000e+00 : f32
    %23 = vector.broadcast %cst_17 : f32 to vector<8x64xf32>
    %24 = arith.maximumf %22, %23 : vector<8x64xf32>
    %25 = arith.truncf %24 : vector<8x64xf32> to vector<8x64xbf16>
    %c0_18 = arith.constant 0 : index
    %c0_19 = arith.constant 0 : index
    %26 = vector.load %arg8[%c0_18, %c0_19] : memref<64x32xbf16, #tpu.memory_space<vmem>>, vector<64x32xbf16>
    %cst_20 = arith.constant dense<0.000000e+00> : vector<8x32xf32>
    %27 = tpu.matmul %25, %26, %cst_20 {dimension_numbers = #tpu.dot_dimension_numbers<[1], [0], [0], [1], [0, 0, 1, 1], [], []>} : vector<8x64xbf16>, vector<64x32xbf16>, vector<8x32xf32> -> vector<8x32xf32>
    %c0_21 = arith.constant 0 : index
    %c0_22 = arith.constant 0 : index
    %28 = vector.load %arg9[%c0_21, %c0_22] : memref<1x32xf32, #tpu.memory_space<vmem>>, vector<1x32xf32>
    %29 = vector.broadcast %28 : vector<1x32xf32> to vector<8x32xf32>
    %30 = arith.addf %27, %29 : vector<8x32xf32>
    %cst_23 = arith.constant 0.000000e+00 : f32
    %31 = vector.broadcast %cst_23 : f32 to vector<8x32xf32>
    %32 = arith.maximumf %30, %31 : vector<8x32xf32>
    %33 = arith.truncf %32 : vector<8x32xf32> to vector<8x32xbf16>
    %c0_24 = arith.constant 0 : index
    %c0_25 = arith.constant 0 : index
    %34 = vector.load %arg10[%c0_24, %c0_25] : memref<32x4xbf16, #tpu.memory_space<vmem>>, vector<32x4xbf16>
    %cst_26 = arith.constant dense<0.000000e+00> : vector<8x4xf32>
    %35 = tpu.matmul %33, %34, %cst_26 {dimension_numbers = #tpu.dot_dimension_numbers<[1], [0], [0], [1], [0, 0, 1, 1], [], []>} : vector<8x32xbf16>, vector<32x4xbf16>, vector<8x4xf32> -> vector<8x4xf32>
    %c0_27 = arith.constant 0 : index
    %c0_28 = arith.constant 0 : index
    %36 = vector.load %arg11[%c0_27, %c0_28] : memref<1x4xf32, #tpu.memory_space<vmem>>, vector<1x4xf32>
    %37 = vector.broadcast %36 : vector<1x4xf32> to vector<8x4xf32>
    %38 = arith.addf %35, %37 : vector<8x4xf32>
    %c0_29 = arith.constant 0 : index
    %c0_30 = arith.constant 0 : index
    %39 = vector.load %arg12[%c0_29, %c0_30] : memref<8x4xf32, #tpu.memory_space<vmem>>, vector<8x4xf32>
    tpu.vector_store %arg12[%c0_29, %c0_30], %38 {strides = array<i32>} : memref<8x4xf32, #tpu.memory_space<vmem>>, vector<8x4xf32>,
    return
  }
  func.func @transform_0(%arg0: i32) -> (i32, i32) {
    %c0_i32 = arith.constant 0 : i32
    %c0_i32_0 = arith.constant 0 : i32
    return %arg0, %c0_i32 : i32, i32
  }
  func.func @transform_1(%arg0: i32) -> (i32, i32) {
    %c0_i32 = arith.constant 0 : i32
    %c0_i32_0 = arith.constant 0 : i32
    %c0_i32_1 = arith.constant 0 : i32
    return %c0_i32, %c0_i32_0 : i32, i32
  }
  func.func @transform_2(%arg0: i32) -> (i32, i32) {
    %c0_i32 = arith.constant 0 : i32
    %c0_i32_0 = arith.constant 0 : i32
    %c0_i32_1 = arith.constant 0 : i32
    return %c0_i32, %c0_i32_0 : i32, i32
  }
  func.func @transform_3(%arg0: i32) -> (i32, i32) {
    %c0_i32 = arith.constant 0 : i32
    %c0_i32_0 = arith.constant 0 : i32
    %c0_i32_1 = arith.constant 0 : i32
    return %c0_i32, %c0_i32_0 : i32, i32
  }
  func.func @transform_4(%arg0: i32) -> (i32, i32) {
    %c0_i32 = arith.constant 0 : i32
    %c0_i32_0 = arith.constant 0 : i32
    %c0_i32_1 = arith.constant 0 : i32
    return %c0_i32, %c0_i32_0 : i32, i32
  }
  func.func @transform_5(%arg0: i32) -> (i32, i32) {
    %c0_i32 = arith.constant 0 : i32
    %c0_i32_0 = arith.constant 0 : i32
    %c0_i32_1 = arith.constant 0 : i32
    return %c0_i32, %c0_i32_0 : i32, i32
  }
  func.func @transform_6(%arg0: i32) -> (i32, i32) {
    %c0_i32 = arith.constant 0 : i32
    %c0_i32_0 = arith.constant 0 : i32
    %c0_i32_1 = arith.constant 0 : i32
    return %c0_i32, %c0_i32_0 : i32, i32
  }
  func.func @transform_7(%arg0: i32) -> (i32, i32) {
    %c0_i32 = arith.constant 0 : i32
    %c0_i32_0 = arith.constant 0 : i32
    %c0_i32_1 = arith.constant 0 : i32
    return %c0_i32, %c0_i32_0 : i32, i32
  }
  func.func @transform_8(%arg0: i32) -> (i32, i32) {
    %c0_i32 = arith.constant 0 : i32
    %c0_i32_0 = arith.constant 0 : i32
    %c0_i32_1 = arith.constant 0 : i32
    return %c0_i32, %c0_i32_0 : i32, i32
  }
  func.func @transform_9(%arg0: i32) -> (i32, i32) {
    %c0_i32 = arith.constant 0 : i32
    %c0_i32_0 = arith.constant 0 : i32
    %c0_i32_1 = arith.constant 0 : i32
    return %c0_i32, %c0_i32_0 : i32, i32
  }
  func.func @transform_10(%arg0: i32) -> (i32, i32) {
    %c0_i32 = arith.constant 0 : i32
    %c0_i32_0 = arith.constant 0 : i32
    %c0_i32_1 = arith.constant 0 : i32
    return %c0_i32, %c0_i32_0 : i32, i32
  }
  func.func @transform_11(%arg0: i32) -> (i32, i32) {
    %c0_i32 = arith.constant 0 : i32
    %c0_i32_0 = arith.constant 0 : i32
    return %arg0, %c0_i32 : i32, i32
  }
}

</mosaic_0001>

<llo_original>
// kernel: tpu_custom_call.1
$region0: #{tpu_custom_call.1}
  #allocation0 [shape = 'u32[]', space=smem, size = 0x4, offset = 0x4, fixed_abs, tag = 'smem constant byte address 0x4 - core index']
  #allocation1 [shape = 'u32[144,128]{1,0:T(1,128)}', space=vmem, size = 0x12000, scoped, tag = 'internal scratch']
  %s0 = inlined_call_operand.vmem [shape: f32[8,32], index: 0, kind: input, shape index: {}]
  %s1 = inlined_call_operand.hbm [shape: bf16[32,256], index: 1, kind: input, shape index: {}]
  %s2 = inlined_call_operand.hbm [shape: f32[1,256], index: 2, kind: input, shape index: {}]
  %s3 = inlined_call_operand.vmem [shape: bf16[256,128], index: 3, kind: input, shape index: {}]
  %s4 = inlined_call_operand.vmem [shape: f32[1,128], index: 4, kind: input, shape index: {}]
  %s5 = inlined_call_operand.vmem [shape: bf16[128,64], index: 5, kind: input, shape index: {}]
  %s6 = inlined_call_operand.vmem [shape: f32[1,64], index: 6, kind: input, shape index: {}]
  %s7 = inlined_call_operand.vmem [shape: bf16[64,32], index: 7, kind: input, shape index: {}]
  %s8 = inlined_call_operand.vmem [shape: f32[1,32], index: 8, kind: input, shape index: {}]
  %s9 = inlined_call_operand.vmem [shape: bf16[32,4], index: 9, kind: input, shape index: {}]
  %s10 = inlined_call_operand.vmem [shape: f32[1,4], index: 10, kind: input, shape index: {}]
  %s11 = inlined_call_operand.vmem [shape: f32[8,4], index: 11, kind: output, shape index: {}]
  %s12 = sld [smem:[#allocation0]]
  $region62: #{tpu_custom_call.1} parent=0
    _
  %s14 = ssub.s32 1, %s12
  %s15 = scalar_select 0, %s14, %s12
  $region1: #{tpu_custom_call.1} parent=0
    #allocation2 [shape = 'u8[16384]{0}', space=vmem, size = 0x4000, scoped, tag = 'input window, operand 1, single buffered']
    #allocation3 [shape = 's32[1]{0}', space=sflag, size = 0x4, scoped, tag = 'scoped memory for tpu_custom_call.1']
    #allocation4 [shape = 'u8[1024]{0}', space=vmem, size = 0x400, scoped, tag = 'input window, operand 2, single buffered']
    #allocation5 [shape = 's32[1]{0}', space=sflag, size = 0x4, scoped, tag = 'scoped memory for tpu_custom_call.1']
    %16 = vsyncpa [#allocation3], 0
    %17 = vsyncpa [#allocation5], 0
    // Predicated region
    $region2: #{tpu_custom_call.1} parent=1 // pred_check
      _
    $region3: #{tpu_custom_call.1} parent=1 // pred_check_branch
      %19 = sbr.rel (0) target = $region5
    $region4: #{tpu_custom_call.1} parent=1 // pred_region
      _
    $region5: #{tpu_custom_call.1} parent=1 // pred_fallthru
      _
    // Predicated region
    $region6: #{tpu_custom_call.1} parent=1 // pred_check
      _
    $region7: #{tpu_custom_call.1} parent=1 // pred_check_branch
      %21 = sbr.rel (0) target = $region9
    $region8: #{tpu_custom_call.1} parent=1 // pred_region
      %s23 = ssub.s32 512, 512
      %24 = vsyncadd [#allocation3], %s23
      %s25 = sshll.u32 [#allocation2], 4
      %s26 = int_to_ptr.vmem [resolvable:$true] %s25
      %31 = dma.hbm_to_vmem [thread:$0]  %s1, 512, %s26, [#allocation3], 128, 128, 8
    $region9: #{tpu_custom_call.1} parent=1 // pred_fallthru
      _
    // Predicated region
    $region10: #{tpu_custom_call.1} parent=1 // pred_check
      _
    $region11: #{tpu_custom_call.1} parent=1 // pred_check_branch
      %33 = sbr.rel (0) target = $region13
    $region12: #{tpu_custom_call.1} parent=1 // pred_region
      %s35 = ssub.s32 32, 32
      %36 = vsyncadd [#allocation5], %s35
      %s38 = sshll.u32 [#allocation4], 4
      %s39 = int_to_ptr.vmem [resolvable:$true] %s38
      %41 = dma.hbm_to_vmem [thread:$0]  %s2, 32, %s39, [#allocation5]
    $region13: #{tpu_custom_call.1} parent=1 // pred_fallthru
      _
    // Predicated region
    $region14: #{tpu_custom_call.1} parent=1 // pred_check
      _
    $region15: #{tpu_custom_call.1} parent=1 // pred_check_branch
      %43 = sbr.rel (0) target = $region17
    $region16: #{tpu_custom_call.1} parent=1 // pred_region
      _
    $region17: #{tpu_custom_call.1} parent=1 // pred_fallthru
      _
    // Predicated region
    $region18: #{tpu_custom_call.1} parent=1 // pred_check
      _
    $region19: #{tpu_custom_call.1} parent=1 // pred_check_branch
      %45 = sbr.rel (0) target = $region21
    $region20: #{tpu_custom_call.1} parent=1 // pred_region
      _
    $region21: #{tpu_custom_call.1} parent=1 // pred_fallthru
      _
    // Predicated region
    $region22: #{tpu_custom_call.1} parent=1 // pred_check
      _
    $region23: #{tpu_custom_call.1} parent=1 // pred_check_branch
      %47 = sbr.rel (0) target = $region25
    $region24: #{tpu_custom_call.1} parent=1 // pred_region
      _
    $region25: #{tpu_custom_call.1} parent=1 // pred_fallthru
      _
    // Predicated region
    $region26: #{tpu_custom_call.1} parent=1 // pred_check
      _
    $region27: #{tpu_custom_call.1} parent=1 // pred_check_branch
      %49 = sbr.rel (0) target = $region29
    $region28: #{tpu_custom_call.1} parent=1 // pred_region
      _
    $region29: #{tpu_custom_call.1} parent=1 // pred_fallthru
      _
    // Predicated region
    $region30: #{tpu_custom_call.1} parent=1 // pred_check
      _
    $region31: #{tpu_custom_call.1} parent=1 // pred_check_branch
      %51 = sbr.rel (0) target = $region33
    $region32: #{tpu_custom_call.1} parent=1 // pred_region
      _
    $region33: #{tpu_custom_call.1} parent=1 // pred_fallthru
      _
    // Predicated region
    $region34: #{tpu_custom_call.1} parent=1 // pred_check
      _
    $region35: #{tpu_custom_call.1} parent=1 // pred_check_branch
      %53 = sbr.rel (0) target = $region37
    $region36: #{tpu_custom_call.1} parent=1 // pred_region
      _
    $region37: #{tpu_custom_call.1} parent=1 // pred_fallthru
      _
    // Predicated region
    $region38: #{tpu_custom_call.1} parent=1 // pred_check
      _
    $region39: #{tpu_custom_call.1} parent=1 // pred_check_branch
      %55 = sbr.rel (0) target = $region41
    $region40: #{tpu_custom_call.1} parent=1 // pred_region
      _
    $region41: #{tpu_custom_call.1} parent=1 // pred_fallthru
      _
    // Predicated region
    $region42: #{tpu_custom_call.1} parent=1 // pred_check
      _
    $region43: #{tpu_custom_call.1} parent=1 // pred_check_branch
      %57 = sbr.rel (0) target = $region45
    $region44: #{tpu_custom_call.1} parent=1 // pred_region
      _
    $region45: #{tpu_custom_call.1} parent=1 // pred_fallthru
      _
    // Predicated region
    $region46: #{tpu_custom_call.1} parent=1 // pred_check
      _
    $region47: #{tpu_custom_call.1} parent=1 // pred_check_branch
      %59 = sbr.rel (0) target = $region49
    $region48: #{tpu_custom_call.1} parent=1 // pred_region
      %60 = dma.done [#allocation3], 512
    $region49: #{tpu_custom_call.1} parent=1 // pred_fallthru
      _
    // Predicated region
    $region50: #{tpu_custom_call.1} parent=1 // pred_check
      _
    $region51: #{tpu_custom_call.1} parent=1 // pred_check_branch
      %62 = sbr.rel (0) target = $region53
    $region52: #{tpu_custom_call.1} parent=1 // pred_region
      %63 = dma.done [#allocation5], 32
    $region53: #{tpu_custom_call.1} parent=1 // pred_fallthru
      _
    %v65 = vld [vmem:[%s0] sm:$0xff]
    %v66 = vpack.c.bf16 %v65, %v65
    %v67 = vld [vmem:[#allocation2] sm:$0xff]
    %v68 = vld [vmem:[#allocation2 + $0x8] sm:$0xff]
    %v69 = vld [vmem:[#allocation2 + $0x10] sm:$0xff]
    %v70 = vld [vmem:[#allocation2 + $0x18] sm:$0xff]
    %v71 = vld [vmem:[#allocation4] sm:$0x3]
    %v73 = vlaneseq
    %v74 = vshrl.u32 %v73, 7
    %v75 = vsub.s32 0, %v74
    %v76 = vrot.slane %v71, %v75
    %v77 = vlaneseq
    %v78 = vshrl.u32 %v77, 7
    %v79 = vsub.s32 1, %v78
    %v80 = vrot.slane %v71, %v79
    %v87 = vunpack.c.l.b16 %v67
    %v88 = vunpack.c.h.b16 %v67
    %v89 = vunpack.c.l.b16 %v68
    %v90 = vunpack.c.h.b16 %v68
    %v91 = vunpack.c.l.b16 %v69
    %v92 = vunpack.c.h.b16 %v69
    %v93 = vunpack.c.l.b16 %v70
    %v94 = vunpack.c.h.b16 %v70
    %v95 = vpack.c.b16 %v89, %v87
    %v96 = vpack.c.b16 %v90, %v88
    %v97 = vpack.c.b16 %v93, %v91
    %v98 = vpack.c.b16 %v94, %v92
    %vm103 = vcmask 261120
    %v105 = vsel %vm103, %v66, 0
    %107 = vmatprep.subr.bf16.mxu0 0
    %108 = vmatpush1.bf16.msra.mxu0 0
    %109 = vmatprep.subr.bf16.mxu0 0
    %110 = vmatpush1.bf16.msra.mxu0 0
    %111 = vmatprep.subr.bf16.mxu0 0
    %112 = vmatpush1.bf16.msra.mxu0 0
    %113 = vmatprep.subr.bf16.mxu0 0
    %114 = vmatpush1.bf16.msra.mxu0 0
    %115 = vmatprep.subr.bf16.mxu0 0
    %116 = vmatpush1.bf16.msra.mxu0 0
    %117 = vmatprep.subr.bf16.mxu0 0
    %118 = vmatpush1.bf16.msra.mxu0 0
    %119 = vmatprep.subr.bf16.mxu0 %v98
    %120 = vmatpush1.bf16.msra.mxu0 %v97
    %121 = vmatprep.subr.bf16.mxu0 %v96
    %122 = vmatpush1.bf16.msra.mxu0 %v95
    %123 = vmatprep.subr.bf16.mxu0 0
    %124 = vmatpush2.bf16.msra.mxu0 0
    %125 = vmatprep.subr.bf16.mxu0 0
    %126 = vmatpush2.bf16.msra.mxu0 0
    %127 = vmatprep.subr.bf16.mxu0 0
    %128 = vmatpush2.bf16.msra.mxu0 0
    %129 = vmatprep.subr.bf16.mxu0 0
    %130 = vmatpush2.bf16.msra.mxu0 0
    %131 = vmatprep.subr.bf16.mxu0 0
    %132 = vmatpush2.bf16.msra.mxu0 0
    %133 = vmatprep.subr.bf16.mxu0 0
    %134 = vmatpush2.bf16.msra.mxu0 0
    %135 = vmatprep.subr.bf16.mxu0 0
    %136 = vmatpush2.bf16.msra.mxu0 0
    %137 = vmatprep.subr.bf16.mxu0 0
    %138 = vmatpush2.bf16.msra.mxu0 0
    %139 = vmatprep.mubr.bf16.mxu0 0
    %140 = vmatmul.mubr.bf16.gmra.mxu0 %v105
    %v141 = vpop.f32.mrf.mxu0
    %v142 = vadd.f32 %v76, %v141
    %v143 = vpop.f32.mrf.mxu0
    %v144 = vadd.f32 %v80, %v143
    %v145 = vpop.f32.mrf.mxu0
    %v146 = vpop.f32.mrf.mxu0
    %147 = vdwg.mxu0
    %v148 = vmax.f32 %v142, 0.0
    %v149 = vmax.f32 %v144, 0.0
    %v150 = vpack.c.bf16 %v148, %v148
    %v151 = vpack.c.bf16 %v149, %v149
    %v152 = vld [vmem:[%s3] sm:$0xf]
    %v153 = vld [vmem:[%s3 + $0x4] sm:$0xf]
    %v154 = vld [vmem:[%s3 + $0x8] sm:$0xf]
    %v155 = vld [vmem:[%s3 + $0xc] sm:$0xf]
    %v156 = vld [vmem:[%s3 + $0x10] sm:$0xf]
    %v157 = vld [vmem:[%s3 + $0x14] sm:$0xf]
    %v158 = vld [vmem:[%s3 + $0x18] sm:$0xf]
    %v159 = vld [vmem:[%s3 + $0x1c] sm:$0xf]
    %v160 = vld [vmem:[%s3 + $0x20] sm:$0xf]
    %v161 = vld [vmem:[%s3 + $0x24] sm:$0xf]
    %v162 = vld [vmem:[%s3 + $0x28] sm:$0xf]
    %v163 = vld [vmem:[%s3 + $0x2c] sm:$0xf]
    %v164 = vld [vmem:[%s3 + $0x30] sm:$0xf]
    %v165 = vld [vmem:[%s3 + $0x34] sm:$0xf]
    %v166 = vld [vmem:[%s3 + $0x38] sm:$0xf]
    %v167 = vld [vmem:[%s3 + $0x3c] sm:$0xf]
    %v168 = vld [vmem:[%s3 + $0x40] sm:$0xf]
    %v169 = vld [vmem:[%s3 + $0x44] sm:$0xf]
    %v170 = vld [vmem:[%s3 + $0x48] sm:$0xf]
    %v171 = vld [vmem:[%s3 + $0x4c] sm:$0xf]
    %v172 = vld [vmem:[%s3 + $0x50] sm:$0xf]
    %v173 = vld [vmem:[%s3 + $0x54] sm:$0xf]
    %v174 = vld [vmem:[%s3 + $0x58] sm:$0xf]
    %v175 = vld [vmem:[%s3 + $0x5c] sm:$0xf]
    %v176 = vld [vmem:[%s3 + $0x60] sm:$0xf]
    %v177 = vld [vmem:[%s3 + $0x64] sm:$0xf]
    %v178 = vld [vmem:[%s3 + $0x68] sm:$0xf]
    %v179 = vld [vmem:[%s3 + $0x6c] sm:$0xf]
    %v180 = vld [vmem:[%s3 + $0x70] sm:$0xf]
    %v181 = vld [vmem:[%s3 + $0x74] sm:$0xf]
    %v182 = vld [vmem:[%s3 + $0x78] sm:$0xf]
    %v183 = vld [vmem:[%s3 + $0x7c] sm:$0xf]
    %v184 = vld [vmem:[%s4] sm:$0x1]
    %v186 = vlaneseq
    %v187 = vshrl.u32 %v186, 7
    %v188 = vsub.s32 0, %v187
    %v189 = vrot.slane %v184, %v188
    %v223 = vunpack.c.l.b16 %v152
    %v224 = vunpack.c.l.b16 %v153
    %v225 = vunpack.c.l.b16 %v154
    %v226 = vunpack.c.l.b16 %v155
    %v227 = vunpack.c.l.b16 %v156
    %v228 = vunpack.c.l.b16 %v157
    %v229 = vunpack.c.l.b16 %v158
    %v230 = vunpack.c.l.b16 %v159
    %v231 = vunpack.c.l.b16 %v160
    %v232 = vunpack.c.l.b16 %v161
    %v233 = vunpack.c.l.b16 %v162
    %v234 = vunpack.c.l.b16 %v163
    %v235 = vunpack.c.l.b16 %v164
    %v236 = vunpack.c.l.b16 %v165
    %v237 = vunpack.c.l.b16 %v166
    %v238 = vunpack.c.l.b16 %v167
    %v239 = vunpack.c.l.b16 %v168
    %v240 = vunpack.c.l.b16 %v169
    %v241 = vunpack.c.l.b16 %v170
    %v242 = vunpack.c.l.b16 %v171
    %v243 = vunpack.c.l.b16 %v172
    %v244 = vunpack.c.l.b16 %v173
    %v245 = vunpack.c.l.b16 %v174
    %v246 = vunpack.c.l.b16 %v175
    %v247 = vunpack.c.l.b16 %v176
    %v248 = vunpack.c.l.b16 %v177
    %v249 = vunpack.c.l.b16 %v178
    %v250 = vunpack.c.l.b16 %v179
    %v251 = vunpack.c.l.b16 %v180
    %v252 = vunpack.c.l.b16 %v181
    %v253 = vunpack.c.l.b16 %v182
    %v254 = vunpack.c.l.b16 %v183
    %v255 = vpack.c.b16 %v224, %v223
    %v256 = vpack.c.b16 %v226, %v225
    %v257 = vpack.c.b16 %v228, %v227
    %v258 = vpack.c.b16 %v230, %v229
    %v259 = vpack.c.b16 %v232, %v231
    %v260 = vpack.c.b16 %v234, %v233
    %v261 = vpack.c.b16 %v236, %v235
    %v262 = vpack.c.b16 %v238, %v237
    %v263 = vpack.c.b16 %v240, %v239
    %v264 = vpack.c.b16 %v242, %v241
    %v265 = vpack.c.b16 %v244, %v243
    %v266 = vpack.c.b16 %v246, %v245
    %v267 = vpack.c.b16 %v248, %v247
    %v268 = vpack.c.b16 %v250, %v249
    %v269 = vpack.c.b16 %v252, %v251
    %v270 = vpack.c.b16 %v254, %v253
    %287 = vmatprep.subr.bf16.mxu0 0
    %288 = vmatpush1.bf16.msra.mxu0 %v262
    %289 = vmatprep.subr.bf16.mxu0 0
    %290 = vmatpush1.bf16.msra.mxu0 %v261
    %291 = vmatprep.subr.bf16.mxu0 0
    %292 = vmatpush1.bf16.msra.mxu0 %v260
    %293 = vmatprep.subr.bf16.mxu0 0
    %294 = vmatpush1.bf16.msra.mxu0 %v259
    %295 = vmatprep.subr.bf16.mxu0 0
    %296 = vmatpush1.bf16.msra.mxu0 %v258
    %297 = vmatprep.subr.bf16.mxu0 0
    %298 = vmatpush1.bf16.msra.mxu0 %v257
    %299 = vmatprep.subr.bf16.mxu0 0
    %300 = vmatpush1.bf16.msra.mxu0 %v256
    %301 = vmatprep.subr.bf16.mxu0 0
    %302 = vmatpush1.bf16.msra.mxu0 %v255
    %303 = vmatprep.subr.bf16.mxu0 0
    %304 = vmatpush2.bf16.msra.mxu0 %v270
    %305 = vmatprep.subr.bf16.mxu0 0
    %306 = vmatpush2.bf16.msra.mxu0 %v269
    %307 = vmatprep.subr.bf16.mxu0 0
    %308 = vmatpush2.bf16.msra.mxu0 %v268
    %309 = vmatprep.subr.bf16.mxu0 0
    %310 = vmatpush2.bf16.msra.mxu0 %v267
    %311 = vmatprep.subr.bf16.mxu0 0
    %312 = vmatpush2.bf16.msra.mxu0 %v266
    %313 = vmatprep.subr.bf16.mxu0 0
    %314 = vmatpush2.bf16.msra.mxu0 %v265
    %315 = vmatprep.subr.bf16.mxu0 0
    %316 = vmatpush2.bf16.msra.mxu0 %v264
    %317 = vmatprep.subr.bf16.mxu0 0
    %318 = vmatpush2.bf16.msra.mxu0 %v263
    %319 = vmatprep.mubr.bf16.mxu0 %v151
    %320 = vmatmul.mubr.bf16.gmra.mxu0 %v150
    %v321 = vpop.f32.mrf.mxu0
    %v322 = vadd.f32 %v189, %v321
    %v323 = vpop.f32.mrf.mxu0
    %v324 = vpop.f32.mrf.mxu0
    %v325 = vpop.f32.mrf.mxu0
    %326 = vdwg.mxu0
    %v327 = vmax.f32 %v322, 0.0
    %v328 = vpack.c.bf16 %v327, %v327
    %v329 = vld [vmem:[%s5] sm:$0xf]
    %v330 = vld [vmem:[%s5 + $0x4] sm:$0xf]
    %v331 = vld [vmem:[%s5 + $0x8] sm:$0xf]
    %v332 = vld [vmem:[%s5 + $0xc] sm:$0xf]
    %v333 = vld [vmem:[%s5 + $0x10] sm:$0xf]
    %v334 = vld [vmem:[%s5 + $0x14] sm:$0xf]
    %v335 = vld [vmem:[%s5 + $0x18] sm:$0xf]
    %v336 = vld [vmem:[%s5 + $0x1c] sm:$0xf]
    %v337 = vld [vmem:[%s5 + $0x20] sm:$0xf]
    %v338 = vld [vmem:[%s5 + $0x24] sm:$0xf]
    %v339 = vld [vmem:[%s5 + $0x28] sm:$0xf]
    %v340 = vld [vmem:[%s5 + $0x2c] sm:$0xf]
    %v341 = vld [vmem:[%s5 + $0x30] sm:$0xf]
    %v342 = vld [vmem:[%s5 + $0x34] sm:$0xf]
    %v343 = vld [vmem:[%s5 + $0x38] sm:$0xf]
    %v344 = vld [vmem:[%s5 + $0x3c] sm:$0xf]
    %v345 = vld [vmem:[%s6] sm:$0x1]
    %v347 = vlaneseq
    %v348 = vshrl.u32 %v347, 7
    %v349 = vsub.s32 0, %v348
    %v350 = vrot.slane %v345, %v349
    %v368 = vunpack.c.l.b16 %v329
    %v369 = vunpack.c.l.b16 %v330
    %v370 = vunpack.c.l.b16 %v331
    %v371 = vunpack.c.l.b16 %v332
    %v372 = vunpack.c.l.b16 %v333
    %v373 = vunpack.c.l.b16 %v334
    %v374 = vunpack.c.l.b16 %v335
    %v375 = vunpack.c.l.b16 %v336
    %v376 = vunpack.c.l.b16 %v337
    %v377 = vunpack.c.l.b16 %v338
    %v378 = vunpack.c.l.b16 %v339
    %v379 = vunpack.c.l.b16 %v340
    %v380 = vunpack.c.l.b16 %v341
    %v381 = vunpack.c.l.b16 %v342
    %v382 = vunpack.c.l.b16 %v343
    %v383 = vunpack.c.l.b16 %v344
    %v384 = vpack.c.b16 %v369, %v368
    %v385 = vpack.c.b16 %v371, %v370
    %v386 = vpack.c.b16 %v373, %v372
    %v387 = vpack.c.b16 %v375, %v374
    %v388 = vpack.c.b16 %v377, %v376
    %v389 = vpack.c.b16 %v379, %v378
    %v390 = vpack.c.b16 %v381, %v380
    %v391 = vpack.c.b16 %v383, %v382
    %400 = vmatprep.subr.bf16.mxu0 0
    %401 = vmatpush1.bf16.msra.mxu0 %v391
    %402 = vmatprep.subr.bf16.mxu0 0
    %403 = vmatpush1.bf16.msra.mxu0 %v390
    %404 = vmatprep.subr.bf16.mxu0 0
    %405 = vmatpush1.bf16.msra.mxu0 %v389
    %406 = vmatprep.subr.bf16.mxu0 0
    %407 = vmatpush1.bf16.msra.mxu0 %v388
    %408 = vmatprep.subr.bf16.mxu0 0
    %409 = vmatpush1.bf16.msra.mxu0 %v387
    %410 = vmatprep.subr.bf16.mxu0 0
    %411 = vmatpush1.bf16.msra.mxu0 %v386
    %412 = vmatprep.subr.bf16.mxu0 0
    %413 = vmatpush1.bf16.msra.mxu0 %v385
    %414 = vmatprep.subr.bf16.mxu0 0
    %415 = vmatpush1.bf16.msra.mxu0 %v384
    %416 = vmatprep.subr.bf16.mxu0 0
    %417 = vmatpush2.bf16.msra.mxu0 0
    %418 = vmatprep.subr.bf16.mxu0 0
    %419 = vmatpush2.bf16.msra.mxu0 0
    %420 = vmatprep.subr.bf16.mxu0 0
    %421 = vmatpush2.bf16.msra.mxu0 0
    %422 = vmatprep.subr.bf16.mxu0 0
    %423 = vmatpush2.bf16.msra.mxu0 0
    %424 = vmatprep.subr.bf16.mxu0 0
    %425 = vmatpush2.bf16.msra.mxu0 0
    %426 = vmatprep.subr.bf16.mxu0 0
    %427 = vmatpush2.bf16.msra.mxu0 0
    %428 = vmatprep.subr.bf16.mxu0 0
    %429 = vmatpush2.bf16.msra.mxu0 0
    %430 = vmatprep.subr.bf16.mxu0 0
    %431 = vmatpush2.bf16.msra.mxu0 0
    %432 = vmatprep.mubr.bf16.mxu0 0
    %433 = vmatmul.mubr.bf16.gmra.mxu0 %v328
    %v434 = vpop.f32.mrf.mxu0
    %v435 = vadd.f32 %v350, %v434
    %v436 = vpop.f32.mrf.mxu0
    %v437 = vpop.f32.mrf.mxu0
    %v438 = vpop.f32.mrf.mxu0
    %439 = vdwg.mxu0
    %v440 = vmax.f32 %v435, 0.0
    %v441 = vpack.c.bf16 %v440, %v440
    %v442 = vld [vmem:[%s7] sm:$0xf]
    %v443 = vld [vmem:[%s7 + $0x4] sm:$0xf]
    %v444 = vld [vmem:[%s7 + $0x8] sm:$0xf]
    %v445 = vld [vmem:[%s7 + $0xc] sm:$0xf]
    %v446 = vld [vmem:[%s7 + $0x10] sm:$0xf]
    %v447 = vld [vmem:[%s7 + $0x14] sm:$0xf]
    %v448 = vld [vmem:[%s7 + $0x18] sm:$0xf]
    %v449 = vld [vmem:[%s7 + $0x1c] sm:$0xf]
    %v450 = vld [vmem:[%s8] sm:$0x1]
    %v452 = vlaneseq
    %v453 = vshrl.u32 %v452, 7
    %v454 = vsub.s32 0, %v453
    %v455 = vrot.slane %v450, %v454
    %v465 = vunpack.c.l.b16 %v442
    %v466 = vunpack.c.l.b16 %v443
    %v467 = vunpack.c.l.b16 %v444
    %v468 = vunpack.c.l.b16 %v445
    %v469 = vunpack.c.l.b16 %v446
    %v470 = vunpack.c.l.b16 %v447
    %v471 = vunpack.c.l.b16 %v448
    %v472 = vunpack.c.l.b16 %v449
    %v473 = vpack.c.b16 %v466, %v465
    %v474 = vpack.c.b16 %v468, %v467
    %v475 = vpack.c.b16 %v470, %v469
    %v476 = vpack.c.b16 %v472, %v471
    %vm481 = vcmask 523264
    %v483 = vsel %vm481, %v441, 0
    %485 = vmatprep.subr.bf16.mxu0 0
    %486 = vmatpush1.bf16.msra.mxu0 0
    %487 = vmatprep.subr.bf16.mxu0 0
    %488 = vmatpush1.bf16.msra.mxu0 0
    %489 = vmatprep.subr.bf16.mxu0 0
    %490 = vmatpush1.bf16.msra.mxu0 0
    %491 = vmatprep.subr.bf16.mxu0 0
    %492 = vmatpush1.bf16.msra.mxu0 0
    %493 = vmatprep.subr.bf16.mxu0 0
    %494 = vmatpush1.bf16.msra.mxu0 %v476
    %495 = vmatprep.subr.bf16.mxu0 0
    %496 = vmatpush1.bf16.msra.mxu0 %v475
    %497 = vmatprep.subr.bf16.mxu0 0
    %498 = vmatpush1.bf16.msra.mxu0 %v474
    %499 = vmatprep.subr.bf16.mxu0 0
    %500 = vmatpush1.bf16.msra.mxu0 %v473
    %501 = vmatprep.subr.bf16.mxu0 0
    %502 = vmatpush2.bf16.msra.mxu0 0
    %503 = vmatprep.subr.bf16.mxu0 0
    %504 = vmatpush2.bf16.msra.mxu0 0
    %505 = vmatprep.subr.bf16.mxu0 0
    %506 = vmatpush2.bf16.msra.mxu0 0
    %507 = vmatprep.subr.bf16.mxu0 0
    %508 = vmatpush2.bf16.msra.mxu0 0
    %509 = vmatprep.subr.bf16.mxu0 0
    %510 = vmatpush2.bf16.msra.mxu0 0
    %511 = vmatprep.subr.bf16.mxu0 0
    %512 = vmatpush2.bf16.msra.mxu0 0
    %513 = vmatprep.subr.bf16.mxu0 0
    %514 = vmatpush2.bf16.msra.mxu0 0
    %515 = vmatprep.subr.bf16.mxu0 0
    %516 = vmatpush2.bf16.msra.mxu0 0
    %517 = vmatprep.mubr.bf16.mxu0 0
    %518 = vmatmul.mubr.bf16.gmra.mxu0 %v483
    %v519 = vpop.f32.mrf.mxu0
    %v520 = vadd.f32 %v455, %v519
    %v521 = vpop.f32.mrf.mxu0
    %v522 = vpop.f32.mrf.mxu0
    %v523 = vpop.f32.mrf.mxu0
    %524 = vdwg.mxu0
    %v525 = vmax.f32 %v520, 0.0
    %v526 = vpack.c.bf16 %v525, %v525
    %v527 = vld [vmem:[%s9] sm:$0xf]
    %v528 = vld [vmem:[%s9 + $0x4] sm:$0xf]
    %v529 = vld [vmem:[%s9 + $0x8] sm:$0xf]
    %v530 = vld [vmem:[%s9 + $0xc] sm:$0xf]
    %v531 = vld [vmem:[%s10] sm:$0x1]
    %v533 = vlaneseq
    %v534 = vshrl.u32 %v533, 7
    %v535 = vsub.s32 0, %v534
    %v536 = vrot.slane %v531, %v535
    %v542 = vunpack.c.l.b16 %v527
    %v543 = vunpack.c.l.b16 %v528
    %v544 = vunpack.c.l.b16 %v529
    %v545 = vunpack.c.l.b16 %v530
    %v546 = vpack.c.b16 %v543, %v542
    %v547 = vpack.c.b16 %v545, %v544
    %v551 = vsel %vm103, %v526, 0
    %553 = vmatprep.subr.bf16.mxu0 0
    %554 = vmatpush1.bf16.msra.mxu0 0
    %555 = vmatprep.subr.bf16.mxu0 0
    %556 = vmatpush1.bf16.msra.mxu0 0
    %557 = vmatprep.subr.bf16.mxu0 0
    %558 = vmatpush1.bf16.msra.mxu0 0
    %559 = vmatprep.subr.bf16.mxu0 0
    %560 = vmatpush1.bf16.msra.mxu0 0
    %561 = vmatprep.subr.bf16.mxu0 0
    %562 = vmatpush1.bf16.msra.mxu0 0
    %563 = vmatprep.subr.bf16.mxu0 0
    %564 = vmatpush1.bf16.msra.mxu0 0
    %565 = vmatprep.subr.bf16.mxu0 0
    %566 = vmatpush1.bf16.msra.mxu0 %v547
    %567 = vmatprep.subr.bf16.mxu0 0
    %568 = vmatpush1.bf16.msra.mxu0 %v546
    %569 = vmatprep.subr.bf16.mxu0 0
    %570 = vmatpush2.bf16.msra.mxu0 0
    %571 = vmatprep.subr.bf16.mxu0 0
    %572 = vmatpush2.bf16.msra.mxu0 0
    %573 = vmatprep.subr.bf16.mxu0 0
    %574 = vmatpush2.bf16.msra.mxu0 0
    %575 = vmatprep.subr.bf16.mxu0 0
    %576 = vmatpush2.bf16.msra.mxu0 0
    %577 = vmatprep.subr.bf16.mxu0 0
    %578 = vmatpush2.bf16.msra.mxu0 0
    %579 = vmatprep.subr.bf16.mxu0 0
    %580 = vmatpush2.bf16.msra.mxu0 0
    %581 = vmatprep.subr.bf16.mxu0 0
    %582 = vmatpush2.bf16.msra.mxu0 0
    %583 = vmatprep.subr.bf16.mxu0 0
    %584 = vmatpush2.bf16.msra.mxu0 0
    %585 = vmatprep.mubr.bf16.mxu0 0
    %586 = vmatmul.mubr.bf16.gmra.mxu0 %v551
    %v587 = vpop.f32.mrf.mxu0
    %v588 = vadd.f32 %v536, %v587
    %v589 = vpop.f32.mrf.mxu0
    %v590 = vpop.f32.mrf.mxu0
    %v591 = vpop.f32.mrf.mxu0
    %592 = vdwg.mxu0
    %vm593 = vcmask 31744
    %594 = vst.msk [vmem:[%s11] sm:$0xff] %vm593, %v588
    // Predicated region
    $region54: #{tpu_custom_call.1} parent=1 // pred_check
      _
    $region55: #{tpu_custom_call.1} parent=1 // pred_check_branch
      %596 = sbr.rel (0) target = $region57
    $region56: #{tpu_custom_call.1} parent=1 // pred_region
      _
    $region57: #{tpu_custom_call.1} parent=1 // pred_fallthru
      _
    // Predicated region
    $region58: #{tpu_custom_call.1} parent=1 // pred_check
      _
    $region59: #{tpu_custom_call.1} parent=1 // pred_check_branch
      %598 = sbr.rel (0) target = $region61
    $region60: #{tpu_custom_call.1} parent=1 // pred_region
      _
    $region61: #{tpu_custom_call.1} parent=1 // pred_fallthru
      _
    %599 = vsyncpa [#allocation3], 1
    %600 = vsyncpa [#allocation5], 1

</llo_original>
